<compile_context>
chip_gen: v6e
topology: v6e:2x2x1
jax: 0.10.0
libtpu: 0.0.40
codegen_flags: <defaults>
</compile_context>

<pallas_src>
import jax
import jax.numpy as jnp
from jax.experimental import pallas as pl
from jax.experimental.pallas import tpu as pltpu


def _round_down(x, m):
    return (x // m) * m


def _vmem_capacity_bytes():
    try:
        return int(pltpu.get_tpu_info().vmem_capacity_bytes)
    except Exception:
        return 64 << 20  # conservative default (v7x per-TensorCore VMEM)


def _plan_tiles(r, s, in_bytes_per_elem):
    """Pick (row_tile, col_tile, vmem_limit_bytes) from the chip's VMEM size."""
    vmem_cap = _vmem_capacity_bytes()
    budget = vmem_cap // 2                      # leave half of VMEM as headroom
    # VMEM bytes one block element costs: double-buffered native-dtype inputs
    # plus ~three f32 temporaries (p, t, p*t) materialized in the kernel body.
    vmem_per_elem = 2 * in_bytes_per_elem + 12
    max_elems = max(8 * 128, budget // vmem_per_elem)

    # Column (lane) tile: full spatial extent if an 8-row stripe fits,
    # otherwise the largest multiple of 128 that keeps 8 rows in budget.
    if s <= 128 or 8 * s <= max_elems:
        ts = s
    else:
        ts = 128 * max(1, min(pl.cdiv(s, 128), max_elems // (8 * 128)))
        if ts >= s:
            ts = s

    # Row (sublane) tile: as many rows as fit; full extent or a multiple of 8.
    rows_fit = max(1, max_elems // max(ts, 1))
    if rows_fit >= r:
        tr = r
    else:
        tr = max(8, _round_down(rows_fit, 8))   # rows_fit >= 8 by construction

    # Guarantee >= 2 (fully parallel) grid steps when the data allows, so
    # v7x's two TensorCores both get work even for tiny batches.
    if pl.cdiv(r, tr) * pl.cdiv(s, ts) < 2:
        if r >= 16:
            tr = max(8, _round_down(r // 2, 8))
        elif s >= 256:
            ts = max(128, _round_down(s // 2, 128))

    vmem_limit = int(min(vmem_cap * 3 // 4,
                         max(16 << 20, tr * ts * vmem_per_elem + (8 << 20))))
    return tr, ts, vmem_limit


def _make_dice_sums_kernel(tr, ts, r, s):
    need_row_mask = (r % tr) != 0
    need_col_mask = (s % ts) != 0

    def kernel(pred_ref, targ_ref, out_ref):
        # Native-dtype loads; cast on the VPU (a free slot in a mem-bound kernel).
        p = pred_ref[...].astype(jnp.float32)   # (TR, TS)
        t = targ_ref[...].astype(jnp.float32)

        if need_row_mask or need_col_mask:      # zero-mask the padded tail tile
            valid = None
            if need_row_mask:
                rows = jax.lax.broadcasted_iota(jnp.int32, (tr, ts), 0)
                valid = (pl.program_id(0) * tr + rows) < r
            if need_col_mask:
                cols = jax.lax.broadcasted_iota(jnp.int32, (tr, ts), 1)
                cvalid = (pl.program_id(1) * ts + cols) < s
                valid = cvalid if valid is None else jnp.logical_and(valid, cvalid)
            zero = jnp.zeros_like(p)
            p = jnp.where(valid, p, zero)
            t = jnp.where(valid, t, zero)

        # Per-row (= per sample,class) partial sums over this column tile.
        # Three direct slice stores; no concatenate / vreg shuffling.
        out_ref[0, 0, :, pl.ds(0, 1)] = jnp.sum(p * t, axis=-1, keepdims=True)
        out_ref[0, 0, :, pl.ds(1, 1)] = jnp.sum(p, axis=-1, keepdims=True)
        out_ref[0, 0, :, pl.ds(2, 1)] = jnp.sum(t, axis=-1, keepdims=True)

    return kernel


def dice_loss(pred, target):
    """Equivalent of DiceLoss().forward(pred, target)."""
    assert pred.shape == target.shape
    n, c = pred.shape[0], pred.shape[1]
    s = 1
    for d in pred.shape[2:]:
        s *= d
    r = n * c

    # Contiguous reshape only -- NO dtype cast in the wrapper (the f32 cast is
    # done inside the kernel, after the data is already in VMEM).
    p2 = pred.reshape(r, s)
    t2 = target.reshape(r, s)

    tr, ts, vmem_limit = _plan_tiles(
        r, s, pred.dtype.itemsize + target.dtype.itemsize)
    nrt = pl.cdiv(r, tr)
    nct = pl.cdiv(s, ts)

    partial = pl.pallas_call(
        _make_dice_sums_kernel(tr, ts, r, s),
        out_shape=jax.ShapeDtypeStruct((nrt, nct, tr, 3), jnp.float32),
        grid_spec=pltpu.PrefetchScalarGridSpec(
            num_scalar_prefetch=0,
            grid=(nrt, nct),
            in_specs=[
                pl.BlockSpec((tr, ts), lambda i, j: (i, j)),
                pl.BlockSpec((tr, ts), lambda i, j: (i, j)),
            ],
            out_specs=pl.BlockSpec((1, 1, tr, 3), lambda i, j: (i, j, 0, 0)),
        ),
        compiler_params=pltpu.CompilerParams(
            dimension_semantics=("parallel", "parallel"),
            vmem_limit_bytes=vmem_limit,
        ),
    )(p2, t2)

    # Tiny cross-tile / per-class combine in JAX glue.
    stats = jnp.sum(partial, axis=1)                 # (nrt, tr, 3): sum over column tiles
    stats = stats.reshape(nrt * tr, 3)[:r]           # (R, 3) per (sample, class) row
    per_class = jnp.sum(stats.reshape(n, c, 3), axis=0)   # (C, 3)

    inter = per_class[:, 0]
    sum_p = per_class[:, 1]
    sum_t = per_class[:, 2]

    smooth = 1.0
    # Reference loops class_index = 1..C-1 and SUMS the per-class dice terms.
    dice = jnp.sum((2.0 * inter[1:] + smooth) / (sum_p[1:] + sum_t[1:] + smooth))
    # torch.clamp((1 - dice).mean(), 0, 1); mean of a scalar is the scalar.
    return jnp.clip(1.0 - dice, 0.0, 1.0)


def _dice_loss_ref(pred, target):
    """Pure-JAX replica of the PyTorch reference (for the correctness check)."""
    smooth = 1.0
    c = pred.shape[1]
    dice = 0.0
    for ci in range(1, c):
        inter = jnp.sum(pred[:, ci] * target[:, ci])
        union = jnp.sum(pred[:, ci]) + jnp.sum(target[:, ci])
        dice = dice + (2.0 * inter + smooth) / (union + smooth)
    return jnp.clip(1.0 - dice, 0.0, 1.0)


if __name__ == "__main__":
    key = jax.random.PRNGKey(0)
    k1, k2 = jax.random.split(key)

    # Small NCHW segmentation-style inputs: softmax predictions + one-hot target.
    N, C, H, W = 2, 4, 16, 16
    logits = jax.random.normal(k1, (N, C, H, W), dtype=jnp.float32)
    pred = jax.nn.softmax(logits, axis=1)
    labels = jax.random.randint(k2, (N, H, W), 0, C)
    target = jax.nn.one_hot(labels, C, axis=1, dtype=jnp.float32)  # (N, C, H, W)

    loss = jax.jit(dice_loss)(pred, target)
    jax.block_until_ready(loss)

    ref = _dice_loss_ref(pred, target)
    assert jnp.allclose(loss, ref, atol=1e-5, rtol=1e-5), (loss, ref)

    print("KERNEL_OK")
</pallas_src>

<mosaic_0001>
module attributes {stable_mosaic.version = 11 : i64} {
  func.func @kernel(%arg0: i32, %arg1: i32, %arg2: memref<8x128xf32, #tpu.memory_space<vmem>>, %arg3: memref<8x128xf32, #tpu.memory_space<vmem>>, %arg4: memref<1x1x8x3xf32, #tpu.memory_space<vmem>>) attributes {dimension_semantics = [#tpu.dimension_semantics<parallel>, #tpu.dimension_semantics<parallel>], iteration_bounds = array<i64: 1, 2>, scalar_prefetch = 0 : i64, scratch_operands = 0 : i64, tpu.core_type = #tpu.core_type<tc>, window_params = [{transform_indices = @transform_0, window_bounds = array<i64: 8, 128>}, {transform_indices = @transform_1, window_bounds = array<i64: 8, 128>}, {transform_indices = @transform_2, window_bounds = array<i64: 1, 1, 8, 3>}]} {
    %c0 = arith.constant 0 : index
    %c0_0 = arith.constant 0 : index
    %0 = vector.load %arg2[%c0, %c0_0] : memref<8x128xf32, #tpu.memory_space<vmem>>, vector<8x128xf32>
    %c0_1 = arith.constant 0 : index
    %c0_2 = arith.constant 0 : index
    %1 = vector.load %arg3[%c0_1, %c0_2] : memref<8x128xf32, #tpu.memory_space<vmem>>, vector<8x128xf32>
    %2 = arith.mulf %0, %1 : vector<8x128xf32>
    %cst = arith.constant dense<0.000000e+00> : vector<8xf32>
    %3 = vector.multi_reduction <add>, %2, %cst [1] : vector<8x128xf32> to vector<8xf32>
    %4 = vector.shape_cast %3 : vector<8xf32> to vector<8x1xf32>
    %c0_3 = arith.constant 0 : index
    %c0_4 = arith.constant 0 : index
    %c0_5 = arith.constant 0 : index
    %c0_6 = arith.constant 0 : index
    %5 = vector.load %arg4[%c0_3, %c0_4, %c0_5, %c0_6] : memref<1x1x8x3xf32, #tpu.memory_space<vmem>>, vector<1x1x8x1xf32>
    %6 = vector.shape_cast %5 : vector<1x1x8x1xf32> to vector<8x1xf32>
    %7 = vector.shape_cast %4 : vector<8x1xf32> to vector<1x1x8x1xf32>
    tpu.vector_store %arg4[%c0_3, %c0_4, %c0_5, %c0_6], %7 {strides = array<i32>} : memref<1x1x8x3xf32, #tpu.memory_space<vmem>>, vector<1x1x8x1xf32>,
    %cst_7 = arith.constant dense<0.000000e+00> : vector<8xf32>
    %8 = vector.multi_reduction <add>, %0, %cst_7 [1] : vector<8x128xf32> to vector<8xf32>
    %9 = vector.shape_cast %8 : vector<8xf32> to vector<8x1xf32>
    %c0_8 = arith.constant 0 : index
    %c0_9 = arith.constant 0 : index
    %c0_10 = arith.constant 0 : index
    %c1 = arith.constant 1 : index
    %10 = vector.load %arg4[%c0_8, %c0_9, %c0_10, %c1] : memref<1x1x8x3xf32, #tpu.memory_space<vmem>>, vector<1x1x8x1xf32>
    %11 = vector.shape_cast %10 : vector<1x1x8x1xf32> to vector<8x1xf32>
    %12 = vector.shape_cast %9 : vector<8x1xf32> to vector<1x1x8x1xf32>
    tpu.vector_store %arg4[%c0_8, %c0_9, %c0_10, %c1], %12 {strides = array<i32>} : memref<1x1x8x3xf32, #tpu.memory_space<vmem>>, vector<1x1x8x1xf32>,
    %cst_11 = arith.constant dense<0.000000e+00> : vector<8xf32>
    %13 = vector.multi_reduction <add>, %1, %cst_11 [1] : vector<8x128xf32> to vector<8xf32>
    %14 = vector.shape_cast %13 : vector<8xf32> to vector<8x1xf32>
    %c0_12 = arith.constant 0 : index
    %c0_13 = arith.constant 0 : index
    %c0_14 = arith.constant 0 : index
    %c2 = arith.constant 2 : index
    %15 = vector.load %arg4[%c0_12, %c0_13, %c0_14, %c2] : memref<1x1x8x3xf32, #tpu.memory_space<vmem>>, vector<1x1x8x1xf32>
    %16 = vector.shape_cast %15 : vector<1x1x8x1xf32> to vector<8x1xf32>
    %17 = vector.shape_cast %14 : vector<8x1xf32> to vector<1x1x8x1xf32>
    tpu.vector_store %arg4[%c0_12, %c0_13, %c0_14, %c2], %17 {strides = array<i32>} : memref<1x1x8x3xf32, #tpu.memory_space<vmem>>, vector<1x1x8x1xf32>,
    return
  }
  func.func @transform_0(%arg0: i32, %arg1: i32) -> (i32, i32) {
    %c0_i32 = arith.constant 0 : i32
    return %arg0, %arg1 : i32, i32
  }
  func.func @transform_1(%arg0: i32, %arg1: i32) -> (i32, i32) {
    %c0_i32 = arith.constant 0 : i32
    return %arg0, %arg1 : i32, i32
  }
  func.func @transform_2(%arg0: i32, %arg1: i32) -> (i32, i32, i32, i32) {
    %c0_i32 = arith.constant 0 : i32
    %c0_i32_0 = arith.constant 0 : i32
    %c0_i32_1 = arith.constant 0 : i32
    return %arg0, %arg1, %c0_i32, %c0_i32_0 : i32, i32, i32, i32
  }
}

</mosaic_0001>

<llo_original>
// kernel: dice_loss.1
$region0: #{dice_loss.1}
  #allocation0 [shape = 'u32[]', space=smem, size = 0x4, offset = 0x4, fixed_abs, tag = 'smem constant byte address 0x4 - core index']
  #allocation1 [shape = 'u32[144,128]{1,0:T(1,128)}', space=vmem, size = 0x12000, scoped, tag = 'internal scratch']
  %s0 = inlined_call_operand.vmem [shape: f32[8,256], index: 0, kind: input, shape index: {}]
  %s1 = inlined_call_operand.vmem [shape: f32[8,256], index: 1, kind: input, shape index: {}]
  %s2 = inlined_call_operand.vmem [shape: f32[1,2,8,3], index: 2, kind: output, shape index: {}]
  %s3 = sld [smem:[#allocation0]]
  $region41: #{dice_loss.1} parent=0
    _
  %s5 = ssub.s32 1, %s3
  %s6 = scalar_select 0, %s5, %s3
  loop: start=0, step=1, limit=4
  $region2: #{dice_loss.1} parent=0 // loop_pre_header
    _
  $region3: #{dice_loss.1} parent=0 // loop_header
    %s8 = sphi 0, %s12
    %p9 = scmp.ge.s32.totalorder %s8, 4
    %s15 = sphi 0, %s27
    %s16 = sphi 0, %s23
    %s17 = sphi 0, %s15
    %s18 = sphi 0, %s16
    %s19 = sphi 0, %s17
    %s20 = sphi 0, %s18
    %s32 = sphi 0, %s34
    %s35 = sphi 0, %s32
    %s36 = sphi 0, %s35
    %s52 = sphi 0, %s36
    %s60 = sphi 0, %s62
    %s63 = sphi 0, %s60
    %s64 = sphi 0, %s63
    %s80 = sphi 0, %s64
    %s88 = sphi 0, %s90
    %s91 = sphi 0, %s88
    %s92 = sphi 0, %s91
    %s108 = sphi 0, %s92
  $region4: #{dice_loss.1} parent=0 // loop_header_branch
    %11 = sbr.rel (%p9) target = $region8
  $region5: #{dice_loss.1} parent=0 // loop_body
    %s13 = ssub.s32 %s8, 1
    %s14 = ssub.s32 %s8, 2
    %s21 = sadd.s32 1, %s16
    %p22 = scmp.ge.s32.totalorder %s21, 2
    %s23 = scalar_select %p22, 0, %s21
    %s24 = sadd.s32 1, %s15
    %s25 = scalar_select %p22, %s24, %s15
    %p26 = scmp.ge.s32.totalorder %s25, 1
    %s27 = scalar_select %p26, 0, %s25
    %s28 = ssub.s32 %s15, %s27
    %s29 = ssub.s32 %s16, %s23
    %s30 = sor.u32 %s28, %s29
    %p31 = scmp.eq.s32.totalorder %s30, 0
    %s33 = sadd.s32 %s32, 1
    %s34 = scalar_select %p31, %s32, %s33
    %p37 = pneg %p31
    %p38 = scmp.eq.s32.totalorder %s8, 1
    %p39 = por %p37, %p38
    %p40 = scmp.ne.s32.totalorder %s32, %s35
    %p41 = scmp.eq.s32.totalorder %s8, 0
    %p42 = por %p40, %p41
    %p43 = scmp.ne.s32.totalorder %s32, %s35
    %p44 = scmp.eq.s32.totalorder %s13, 1
    %p45 = por %p43, %p44
    %p46 = scmp.ne.s32.totalorder %s35, %s36
    %p47 = scmp.eq.s32.totalorder %s13, 0
    %p48 = por %p46, %p47
    %p49 = scmp.ne.s32.totalorder %s35, %s36
    %p50 = scmp.eq.s32.totalorder %s14, 1
    %p51 = por %p49, %p50
    %p53 = scmp.ne.s32.totalorder %s36, %s52
    %p54 = scmp.eq.s32.totalorder %s14, 0
    %p55 = por %p53, %p54
    %s56 = ssub.s32 %s15, %s27
    %s57 = ssub.s32 %s16, %s23
    %s58 = sor.u32 %s56, %s57
    %p59 = scmp.eq.s32.totalorder %s58, 0
    %s61 = sadd.s32 %s60, 1
    %s62 = scalar_select %p59, %s60, %s61
    %p65 = pneg %p59
    %p66 = scmp.eq.s32.totalorder %s8, 1
    %p67 = por %p65, %p66
    %p68 = scmp.ne.s32.totalorder %s60, %s63
    %p69 = scmp.eq.s32.totalorder %s8, 0
    %p70 = por %p68, %p69
    %p71 = scmp.ne.s32.totalorder %s60, %s63
    %p72 = scmp.eq.s32.totalorder %s13, 1
    %p73 = por %p71, %p72
    %p74 = scmp.ne.s32.totalorder %s63, %s64
    %p75 = scmp.eq.s32.totalorder %s13, 0
    %p76 = por %p74, %p75
    %p77 = scmp.ne.s32.totalorder %s63, %s64
    %p78 = scmp.eq.s32.totalorder %s14, 1
    %p79 = por %p77, %p78
    %p81 = scmp.ne.s32.totalorder %s64, %s80
    %p82 = scmp.eq.s32.totalorder %s14, 0
    %p83 = por %p81, %p82
    %s84 = ssub.s32 %s15, %s27
    %s85 = ssub.s32 %s16, %s23
    %s86 = sor.u32 %s84, %s85
    %p87 = scmp.eq.s32.totalorder %s86, 0
    %s89 = sadd.s32 %s88, 1
    %s90 = scalar_select %p87, %s88, %s89
    %p93 = pneg %p87
    %p94 = scmp.eq.s32.totalorder %s8, 1
    %p95 = por %p93, %p94
    %p96 = scmp.ne.s32.totalorder %s88, %s91
    %p97 = scmp.eq.s32.totalorder %s8, 0
    %p98 = por %p96, %p97
    %p99 = scmp.ne.s32.totalorder %s88, %s91
    %p100 = scmp.eq.s32.totalorder %s13, 1
    %p101 = por %p99, %p100
    %p102 = scmp.ne.s32.totalorder %s91, %s92
    %p103 = scmp.eq.s32.totalorder %s13, 0
    %p104 = por %p102, %p103
    %p105 = scmp.ne.s32.totalorder %s91, %s92
    %p106 = scmp.eq.s32.totalorder %s14, 1
    %p107 = por %p105, %p106
    %p109 = scmp.ne.s32.totalorder %s92, %s108
    %p110 = scmp.eq.s32.totalorder %s14, 0
    %p111 = por %p109, %p110
    %p112 = scmp.le.s32.totalorder 1, %s8
    %p113 = scmp.lt.s32.totalorder %s8, 3
    %p114 = pnand %p112, %p113
    %p115 = pneg %p114
    // Predicated region
    $region9: #{dice_loss.1} parent=5 // pred_check
      _
    $region10: #{dice_loss.1} parent=5 // pred_check_branch
      %117 = sbr.rel (%p114) target = $region12
    $region11: #{dice_loss.1} parent=5 // pred_region
      %s118 = ssub.s32 %s8, 1
    $region12: #{dice_loss.1} parent=5 // pred_fallthru
      _
    %p119 = scmp.lt.s32.totalorder %s8, 2
    // Predicated region
    $region13: #{dice_loss.1} parent=5 // pred_check
      %p120 = pneg %p119
    $region14: #{dice_loss.1} parent=5 // pred_check_branch
      %122 = sbr.rel (%p120) target = $region16
    $region15: #{dice_loss.1} parent=5 // pred_region
      // Predicated region
      $region17: #{dice_loss.1} parent=15 // pred_check
        %p123 = pneg %p42
      $region18: #{dice_loss.1} parent=15 // pred_check_branch
        %125 = sbr.rel (%p123) target = $region20
      $region19: #{dice_loss.1} parent=15 // pred_region
        %p126 = scmp.lt.s32.totalorder %s15, 0
        %s127 = scalar_select %p126, %s15, 0
        %p128 = scmp.lt.s32.totalorder %s16, 1
        %s129 = scalar_select %p128, %s16, 1
        %s130 = smul.addr %s127, 2
        %s131 = sadd.s32 %s129, %s130
        %s132 = smul.addr %s131, 8
        %s133 = scalar_lea.vmem %s0, %s132
      $region20: #{dice_loss.1} parent=15 // pred_fallthru
        _
      // Predicated region
      $region21: #{dice_loss.1} parent=15 // pred_check
        %p134 = pneg %p70
      $region22: #{dice_loss.1} parent=15 // pred_check_branch
        %136 = sbr.rel (%p134) target = $region24
      $region23: #{dice_loss.1} parent=15 // pred_region
        %p137 = scmp.lt.s32.totalorder %s15, 0
        %s138 = scalar_select %p137, %s15, 0
        %p139 = scmp.lt.s32.totalorder %s16, 1
        %s140 = scalar_select %p139, %s16, 1
        %s141 = smul.addr %s138, 2
        %s142 = sadd.s32 %s140, %s141
        %s143 = smul.addr %s142, 8
        %s144 = scalar_lea.vmem %s1, %s143
      $region24: #{dice_loss.1} parent=15 // pred_fallthru
        _
    $region16: #{dice_loss.1} parent=5 // pred_fallthru
      _
    %p145 = scmp.le.s32.totalorder 1, %s8
    %p146 = scmp.lt.s32.totalorder %s8, 3
    %p147 = pnand %p145, %p146
    %p148 = pneg %p147
    // Predicated region
    $region25: #{dice_loss.1} parent=5 // pred_check
      _
    $region26: #{dice_loss.1} parent=5 // pred_check_branch
      %150 = sbr.rel (%p147) target = $region28
    $region27: #{dice_loss.1} parent=5 // pred_region
      %s151 = ssub.s32 %s8, 1
      %p152 = scmp.lt.s32.totalorder %s17, 0
      %s153 = scalar_select %p152, %s17, 0
      %p154 = scmp.lt.s32.totalorder %s18, 1
      %s155 = scalar_select %p154, %s18, 1
      %s156 = smul.addr %s153, 2
      %s157 = sadd.s32 %s155, %s156
      %s158 = smul.addr %s157, 8
      %s159 = scalar_lea.vmem %s0, %s158
      %p160 = pneg %p48
      %p161 = pneg %p45
      %p162 = scmp.lt.s32.totalorder %s17, 0
      %s163 = scalar_select %p162, %s17, 0
      %p164 = scmp.lt.s32.totalorder %s18, 1
      %s165 = scalar_select %p164, %s18, 1
      %s166 = smul.addr %s163, 2
      %s167 = sadd.s32 %s165, %s166
      %s168 = smul.addr %s167, 8
      %s169 = scalar_lea.vmem %s1, %s168
      %p170 = pneg %p76
      %p171 = pneg %p73
      %p172 = pneg %p104
      %p173 = pneg %p101
      %p174 = scmp.lt.s32.totalorder %s17, 0
      %s175 = scalar_select %p174, %s17, 0
      %p176 = scmp.lt.s32.totalorder %s18, 1
      %s177 = scalar_select %p176, %s18, 1
      %s178 = smul.addr %s175, 2
      %s179 = sadd.s32 %s177, %s178
      %s180 = smul.addr %s179, 8
      %s181 = scalar_lea.vmem %s2, %s180
      %p182 = scmp.lt.s32.totalorder %s17, 0
      %s183 = scalar_select %p182, %s17, 0
      %p184 = scmp.lt.s32.totalorder %s18, 1
      %s185 = scalar_select %p184, %s18, 1
      %s186 = smul.addr %s183, 2
      %s187 = sadd.s32 %s185, %s186
      %s188 = smul.addr %s187, 8
      %s189 = scalar_lea.vmem %s0, %s188
      %p190 = scmp.lt.s32.totalorder %s17, 0
      %s191 = scalar_select %p190, %s17, 0
      %p192 = scmp.lt.s32.totalorder %s18, 1
      %s193 = scalar_select %p192, %s18, 1
      %s194 = smul.addr %s191, 2
      %s195 = sadd.s32 %s193, %s194
      %s196 = smul.addr %s195, 8
      %s197 = scalar_lea.vmem %s1, %s196
      %p198 = scmp.lt.s32.totalorder %s17, 0
      %s199 = scalar_select %p198, %s17, 0
      %p200 = scmp.lt.s32.totalorder %s18, 1
      %s201 = scalar_select %p200, %s18, 1
      %s202 = smul.addr %s199, 2
      %s203 = sadd.s32 %s201, %s202
      %s204 = smul.addr %s203, 8
      %s205 = scalar_lea.vmem %s2, %s204
      %v206 = vld [vmem:[%s189] sm:$0xff]
      %v207 = vld [vmem:[%s197] sm:$0xff]
      %v208 = vmul.f32 %v206, %v207
      %209 = vadd.xlane.f32.xlu0 %v208
      %v210 = vpop.xlane.xlu0 %209
      %vm211 = vcmask 7168
      %212 = vst.msk [vmem:[%s205] sm:$0xff] %vm211, %v210
      %213 = vadd.xlane.f32.xlu0 %v206
      %v214 = vpop.xlane.xlu0 %213
      %vm215 = vcmask 15368
      %216 = vst.msk [vmem:[%s205] sm:$0xff] %vm215, %v214
      %217 = vadd.xlane.f32.xlu0 %v207
      %v218 = vpop.xlane.xlu0 %217
      %vm219 = vcmask 23568
      %220 = vst.msk [vmem:[%s205] sm:$0xff] %vm219, %v218
      %p221 = scmp.lt.s32.totalorder %s17, 0
      %s222 = scalar_select %p221, %s17, 0
      %p223 = scmp.lt.s32.totalorder %s18, 1
      %s224 = scalar_select %p223, %s18, 1
      %s225 = smul.addr %s222, 2
      %s226 = sadd.s32 %s224, %s225
      %s227 = smul.addr %s226, 8
      %s228 = scalar_lea.vmem %s2, %s227
      // Predicated region
      $region29: #{dice_loss.1} parent=27 // pred_check
        %p229 = pneg %p101
      $region30: #{dice_loss.1} parent=27 // pred_check_branch
        %231 = sbr.rel (%p229) target = $region32
      $region31: #{dice_loss.1} parent=27 // pred_region
        _
      $region32: #{dice_loss.1} parent=27 // pred_fallthru
        _
    $region28: #{dice_loss.1} parent=5 // pred_fallthru
      _
    %p232 = scmp.le.s32.totalorder 2, %s8
    // Predicated region
    $region33: #{dice_loss.1} parent=5 // pred_check
      %p233 = pneg %p232
    $region34: #{dice_loss.1} parent=5 // pred_check_branch
      %235 = sbr.rel (%p233) target = $region36
    $region35: #{dice_loss.1} parent=5 // pred_region
      %s236 = ssub.s32 %s8, 2
      // Predicated region
      $region37: #{dice_loss.1} parent=35 // pred_check
        %p237 = pneg %p107
      $region38: #{dice_loss.1} parent=35 // pred_check_branch
        %239 = sbr.rel (%p237) target = $region40
      $region39: #{dice_loss.1} parent=35 // pred_region
        %p240 = scmp.lt.s32.totalorder %s19, 0
        %s241 = scalar_select %p240, %s19, 0
        %p242 = scmp.lt.s32.totalorder %s20, 1
        %s243 = scalar_select %p242, %s20, 1
        %s244 = smul.addr %s241, 2
        %s245 = sadd.s32 %s243, %s244
        %s246 = smul.addr %s245, 8
        %s247 = scalar_lea.vmem %s2, %s246
      $region40: #{dice_loss.1} parent=35 // pred_fallthru
        _
    $region36: #{dice_loss.1} parent=5 // pred_fallthru
      _
  $region6: #{dice_loss.1} parent=0 // loop_footer
    %s12 = sadd.s32 1, %s8
  $region7: #{dice_loss.1} parent=0 // loop_footer_branch
    %7 = sbr.rel target = $region3
  $region8: #{dice_loss.1} parent=0 // loop_exit
    _

</llo_original>
